<compile_context>
chip_gen: v6e
topology: v6e:2x2x1
jax: 0.10.0
libtpu: 0.0.40
codegen_flags: <defaults>
</compile_context>

<pallas_src>
import functools
import math

import jax
import jax.numpy as jnp
from jax import lax
from jax.experimental import pallas as pl
from jax.experimental.pallas import tpu as pltpu

MIN_LOGSTD = -4.0
MAX_LOGSTD = 15.0
_HALF_LOG_2PI = 0.5 * math.log(2.0 * math.pi)


def _round_up(n, m):
    return ((n + m - 1) // m) * m


def _default_batch_tile(B, cap=2048):
    """Batch tile: >=2 grid steps (v7x megacore) when the batch is big enough, as large
    as possible (<= cap) to amortize per-step overhead on single-core v5e/v6e, and an
    exact divisor of B whenever feasible so no wrapper-side jnp.pad pass is needed."""
    if B <= 16 or (B % 8 != 0 and B <= cap):
        return B  # single step; block dim == full array dim (no padding required)
    if B % 8 == 0:
        t = min(cap, (B // 2) // 8 * 8)
        while t >= 8 and B % t != 0:
            t -= 8
        if t >= 8 and (t >= 256 or B <= 4096):
            return t
    b8 = _round_up(B, 8)
    return min(cap, _round_up((b8 + 1) // 2, 8))  # padding path (awkward batch sizes)


# ----------------------------------------------------------------------------
# Kernel
# ----------------------------------------------------------------------------
def _ebm_energy_kernel(
    x_ref, a_ref, idx_ref,
    w1x_ref, w1a_ref, b1_ref,      # layer 1, packed across branches (2H wide)
    w2a_ref, w2r_ref, b2_ref,      # layer 2, split per branch (H,H) each
    wha_ref, bha_ref,              # action heads packed: [mu | logstd]  (H, 2A)
    whr_ref, bhr_ref,              # rtg head: (H, NQ)
    out_ref,                       # (TB, 2): lane 0 = energy_a, lane 1 = energy_r
    *, hidden, action_size,
):
    f32 = jnp.float32
    H = hidden
    A = action_size
    wdt = w1x_ref.dtype            # weight dtype (f32 or bf16); accumulation stays f32

    a_f32 = a_ref[...].astype(f32)  # action in f32 for the Gaussian residual

    # ---- layer 1: both encoder branches in one pass ([:, :H]=action, [:, H:]=rtg) ----
    h1 = (jnp.dot(x_ref[...].astype(wdt), w1x_ref[...], preferred_element_type=f32)
          + jnp.dot(a_ref[...].astype(wdt), w1a_ref[...], preferred_element_type=f32)
          + b1_ref[...].astype(f32))
    h1 = jnp.maximum(h1, 0.0)                                   # (TB, 2H)

    # ---- layer 2: split per branch (no block-diagonal zero MACs) ----
    h2a = jnp.maximum(
        jnp.dot(h1[:, :H].astype(wdt), w2a_ref[...], preferred_element_type=f32)
        + b2_ref[:, :H].astype(f32), 0.0)                       # (TB, H)
    h2r = jnp.maximum(
        jnp.dot(h1[:, H:].astype(wdt), w2r_ref[...], preferred_element_type=f32)
        + b2_ref[:, H:].astype(f32), 0.0)                       # (TB, H)

    # ---- heads ----
    head_a = (jnp.dot(h2a.astype(wdt), wha_ref[...], preferred_element_type=f32)
              + bha_ref[...].astype(f32))                       # (TB, 2A) = [mu | logstd]
    logits = (jnp.dot(h2r.astype(wdt), whr_ref[...], preferred_element_type=f32)
              + bhr_ref[...].astype(f32))                       # (TB, NQ)

    # ---- Gaussian log-prob -> energy_a ----
    mu = head_a[:, :A]
    logstd = jnp.clip(head_a[:, A:], MIN_LOGSTD, MAX_LOGSTD)
    inv_var = jnp.exp(-2.0 * logstd)
    log_prob_a = -0.5 * (a_f32 - mu) ** 2 * inv_var - logstd - _HALF_LOG_2PI
    energy_a = -jnp.sum(log_prob_a, axis=-1, keepdims=True)     # (TB, 1)

    # ---- Categorical log-prob -> energy_r (one-hot mask-and-sum, no gather) ----
    m = jnp.max(logits, axis=-1, keepdims=True)
    lse = m + jnp.log(jnp.sum(jnp.exp(logits - m), axis=-1, keepdims=True))
    iota = lax.broadcasted_iota(jnp.int32, logits.shape, 1)
    onehot = (iota == idx_ref[...]).astype(f32)                 # idx_ref is (TB, 1) int32
    chosen = jnp.sum(logits * onehot, axis=-1, keepdims=True)
    energy_r = lse - chosen                                     # (TB, 1)

    # two direct sub-stores (no lane concat)
    out_ref[:, 0:1] = energy_a
    out_ref[:, 1:2] = energy_r


# ----------------------------------------------------------------------------
# Wrapper
# ----------------------------------------------------------------------------
def ebm_compute_energy(x, action, rtg_t_idx, packed, *, batch_tile=None):
    """Fused EBM.compute_energy. Returns (energy_a, energy_r), each shape (B,), float32."""
    B, obs_dim = x.shape
    A = action.shape[1]
    H = packed["w2a"].shape[0]

    idx2d = jnp.asarray(rtg_t_idx, jnp.int32).reshape(B, 1)

    if batch_tile is None:
        TB = _default_batch_tile(B)
    else:
        TB = min(_round_up(batch_tile, 8), _round_up(B, 8))
    if TB != B:
        TB = _round_up(TB, 8)
    Bp = B if TB == B else _round_up(B, TB)

    xs, acts, idxs = x, action, idx2d
    if Bp != B:
        pad = Bp - B
        xs = jnp.pad(x, ((0, pad), (0, 0)))
        acts = jnp.pad(action, ((0, pad), (0, 0)))
        idxs = jnp.pad(idx2d, ((0, pad), (0, 0)))

    grid = (Bp // TB,)

    def batched(ncols):
        return pl.BlockSpec((TB, ncols), lambda i: (i, 0))

    def whole(arr):
        # Resident weight/bias block: constant index_map -> fetched once, reused per step.
        return pl.BlockSpec(arr.shape, lambda i: (0, 0))

    kernel = functools.partial(_ebm_energy_kernel, hidden=H, action_size=A)

    out = pl.pallas_call(
        kernel,
        out_shape=jax.ShapeDtypeStruct((Bp, 2), jnp.float32),
        grid=grid,
        in_specs=[
            batched(obs_dim), batched(A), batched(1),
            whole(packed["w1x"]), whole(packed["w1act"]), whole(packed["b1"]),
            whole(packed["w2a"]), whole(packed["w2r"]), whole(packed["b2"]),
            whole(packed["wha"]), whole(packed["bha"]),
            whole(packed["whr"]), whole(packed["bhr"]),
        ],
        out_specs=batched(2),
        compiler_params=pltpu.CompilerParams(dimension_semantics=("parallel",)),
    )(xs, acts, idxs,
      packed["w1x"], packed["w1act"], packed["b1"],
      packed["w2a"], packed["w2r"], packed["b2"],
      packed["wha"], packed["bha"],
      packed["whr"], packed["bhr"])

    return out[:B, 0], out[:B, 1]


# ----------------------------------------------------------------------------
# Parameter handling (raw = PyTorch-layout params; packed = kernel operands)
# ----------------------------------------------------------------------------
def pack_ebm_params(raw, obs_dim, action_size, hidden, n_quantiles,
                    param_dtype=jnp.bfloat16):
    """Pack per-layer weights into kernel operands. Weights may be bf16 (default);
    biases and all accumulation stay f32."""
    del obs_dim, n_quantiles  # shapes come from the raw arrays
    H, A = hidden, action_size
    f32 = jnp.float32
    wd = param_dtype

    w1x = jnp.concatenate([raw["w1a"], raw["w1rx"]], axis=-1)          # (obs, 2H)
    w1act = jnp.concatenate([jnp.zeros((A, H), f32), raw["w1ra"]], axis=-1)  # (A, 2H)
    b1 = jnp.concatenate([raw["b1a"], raw["b1r"]], axis=-1)            # (1, 2H)
    b2 = jnp.concatenate([raw["b2a"], raw["b2r"]], axis=-1)            # (1, 2H)
    wha = jnp.concatenate([raw["wmu"], raw["wls"]], axis=-1)           # (H, 2A)
    bha = jnp.concatenate([raw["bmu"], raw["bls"]], axis=-1)           # (1, 2A)

    return {
        "w1x": w1x.astype(wd), "w1act": w1act.astype(wd), "b1": b1.astype(f32),
        "w2a": raw["w2a"].astype(wd), "w2r": raw["w2r"].astype(wd), "b2": b2.astype(f32),
        "wha": wha.astype(wd), "bha": bha.astype(f32),
        "whr": raw["wrtg"].astype(wd), "bhr": raw["brtg"].astype(f32),
    }


def _init_raw_params(key, obs_dim, action_size, hidden, n_quantiles):
    ks = jax.random.split(key, 8)
    s = 0.1
    f32 = jnp.float32

    def w(k, shape):
        return (s * jax.random.normal(k, shape)).astype(f32)

    return {
        # action branch MLP: obs -> hidden -> hidden
        "w1a": w(ks[0], (obs_dim, hidden)), "b1a": jnp.zeros((1, hidden), f32),
        "w2a": w(ks[1], (hidden, hidden)),  "b2a": jnp.zeros((1, hidden), f32),
        # rtg branch MLP: concat(obs, action) -> hidden -> hidden
        "w1rx": w(ks[2], (obs_dim, hidden)),
        "w1ra": w(ks[3], (action_size, hidden)),
        "b1r": jnp.zeros((1, hidden), f32),
        "w2r": w(ks[4], (hidden, hidden)), "b2r": jnp.zeros((1, hidden), f32),
        # heads
        "wmu": w(ks[5], (hidden, action_size)),  "bmu": jnp.zeros((1, action_size), f32),
        "wls": w(ks[6], (hidden, action_size)),  "bls": jnp.zeros((1, action_size), f32),
        "wrtg": w(ks[7], (hidden, n_quantiles)), "brtg": jnp.zeros((1, n_quantiles), f32),
    }


def _reference(x, action, rtg_t_idx, p):
    h = jax.nn.relu(x @ p["w1a"] + p["b1a"])
    h = jax.nn.relu(h @ p["w2a"] + p["b2a"])
    mu = h @ p["wmu"] + p["bmu"]
    logstd = jnp.clip(h @ p["wls"] + p["bls"], MIN_LOGSTD, MAX_LOGSTD)
    std = jnp.exp(logstd)
    logp = -0.5 * ((action - mu) / std) ** 2 - logstd - 0.5 * jnp.log(2.0 * jnp.pi)
    energy_a = -jnp.sum(logp, axis=-1)

    hr = jax.nn.relu(x @ p["w1rx"] + action @ p["w1ra"] + p["b1r"])
    hr = jax.nn.relu(hr @ p["w2r"] + p["b2r"])
    logits = hr @ p["wrtg"] + p["brtg"]
    logz = jax.nn.logsumexp(logits, axis=-1)
    chosen = jnp.take_along_axis(
        logits, rtg_t_idx[:, None].astype(jnp.int32), axis=-1)[:, 0]
    energy_r = logz - chosen
    return energy_a, energy_r


if __name__ == "__main__":
    OBS, ACT, HID, NQ = 16, 4, 32, 8
    key = jax.random.PRNGKey(0)
    kp, kd = jax.random.split(key)
    raw = _init_raw_params(kp, OBS, ACT, HID, NQ)

    # ---- case 1: small batch (single grid step), f32 weights, tight tolerance ----
    B = 8
    kx, ka, ki = jax.random.split(jax.random.fold_in(kd, 0), 3)
    x = jax.random.normal(kx, (B, OBS), dtype=jnp.float32)
    action = jax.random.normal(ka, (B, ACT), dtype=jnp.float32)
    rtg_t_idx = jax.random.randint(ki, (B,), 0, NQ, dtype=jnp.int32)
    ref_a, ref_r = _reference(x, action, rtg_t_idx, raw)

    packed_f32 = pack_ebm_params(raw, OBS, ACT, HID, NQ, param_dtype=jnp.float32)
    ea, er = ebm_compute_energy(x, action, rtg_t_idx, packed_f32)
    jax.block_until_ready((ea, er))
    assert jnp.allclose(ea, ref_a, atol=1e-4, rtol=1e-4), (ea, ref_a)
    assert jnp.allclose(er, ref_r, atol=1e-4, rtol=1e-4), (er, ref_r)

    # default packing (bf16 weights, f32 accumulation) - looser tolerance
    packed_bf16 = pack_ebm_params(raw, OBS, ACT, HID, NQ)
    ea16, er16 = ebm_compute_energy(x, action, rtg_t_idx, packed_bf16)
    jax.block_until_ready((ea16, er16))
    assert jnp.allclose(ea16, ref_a, atol=5e-2, rtol=5e-2), (ea16, ref_a)
    assert jnp.allclose(er16, ref_r, atol=5e-2, rtol=5e-2), (er16, ref_r)

    # ---- case 2: batch that exercises a multi-step grid (no padding needed) ----
    B2 = 24
    kx2, ka2, ki2 = jax.random.split(jax.random.fold_in(kd, 1), 3)
    x2 = jax.random.normal(kx2, (B2, OBS), dtype=jnp.float32)
    action2 = jax.random.normal(ka2, (B2, ACT), dtype=jnp.float32)
    idx2 = jax.random.randint(ki2, (B2,), 0, NQ, dtype=jnp.int32)
    ref_a2, ref_r2 = _reference(x2, action2, idx2, raw)
    ea2, er2 = ebm_compute_energy(x2, action2, idx2, packed_f32)
    jax.block_until_ready((ea2, er2))
    assert jnp.allclose(ea2, ref_a2, atol=1e-4, rtol=1e-4), (ea2, ref_a2)
    assert jnp.allclose(er2, ref_r2, atol=1e-4, rtol=1e-4), (er2, ref_r2)

    print("KERNEL_OK")
</pallas_src>

<mosaic_0001>
module attributes {stable_mosaic.version = 11 : i64} {
  func.func @_ebm_energy_kernel(%arg0: i32, %arg1: memref<8x16xf32, #tpu.memory_space<vmem>>, %arg2: memref<8x4xf32, #tpu.memory_space<vmem>>, %arg3: memref<8x1xi32, #tpu.memory_space<vmem>>, %arg4: memref<16x64xf32, #tpu.memory_space<vmem>>, %arg5: memref<4x64xf32, #tpu.memory_space<vmem>>, %arg6: memref<1x64xf32, #tpu.memory_space<vmem>>, %arg7: memref<32x32xf32, #tpu.memory_space<vmem>>, %arg8: memref<32x32xf32, #tpu.memory_space<vmem>>, %arg9: memref<1x64xf32, #tpu.memory_space<vmem>>, %arg10: memref<32x8xf32, #tpu.memory_space<vmem>>, %arg11: memref<1x8xf32, #tpu.memory_space<vmem>>, %arg12: memref<32x8xf32, #tpu.memory_space<vmem>>, %arg13: memref<1x8xf32, #tpu.memory_space<vmem>>, %arg14: memref<8x2xf32, #tpu.memory_space<vmem>>) attributes {dimension_semantics = [#tpu.dimension_semantics<parallel>], iteration_bounds = array<i64: 1>, scalar_prefetch = 0 : i64, scratch_operands = 0 : i64, tpu.core_type = #tpu.core_type<tc>, window_params = [{transform_indices = @transform_0, window_bounds = array<i64: 8, 16>}, {transform_indices = @transform_1, window_bounds = array<i64: 8, 4>}, {transform_indices = @transform_2, window_bounds = array<i64: 8, 1>}, {pipeline_mode = #tpu.pipeline_mode<synchronous>, transform_indices = @transform_3, window_bounds = array<i64: 16, 64>}, {pipeline_mode = #tpu.pipeline_mode<synchronous>, transform_indices = @transform_4, window_bounds = array<i64: 4, 64>}, {pipeline_mode = #tpu.pipeline_mode<synchronous>, transform_indices = @transform_5, window_bounds = array<i64: 1, 64>}, {pipeline_mode = #tpu.pipeline_mode<synchronous>, transform_indices = @transform_6, window_bounds = array<i64: 32, 32>}, {pipeline_mode = #tpu.pipeline_mode<synchronous>, transform_indices = @transform_7, window_bounds = array<i64: 32, 32>}, {pipeline_mode = #tpu.pipeline_mode<synchronous>, transform_indices = @transform_8, window_bounds = array<i64: 1, 64>}, {pipeline_mode = #tpu.pipeline_mode<synchronous>, transform_indices = @transform_9, window_bounds = array<i64: 32, 8>}, {pipeline_mode = #tpu.pipeline_mode<synchronous>, transform_indices = @transform_10, window_bounds = array<i64: 1, 8>}, {pipeline_mode = #tpu.pipeline_mode<synchronous>, transform_indices = @transform_11, window_bounds = array<i64: 32, 8>}, {pipeline_mode = #tpu.pipeline_mode<synchronous>, transform_indices = @transform_12, window_bounds = array<i64: 1, 8>}, {transform_indices = @transform_13, window_bounds = array<i64: 8, 2>}]} {
    %c0 = arith.constant 0 : index
    %c0_0 = arith.constant 0 : index
    %0 = vector.load %arg2[%c0, %c0_0] : memref<8x4xf32, #tpu.memory_space<vmem>>, vector<8x4xf32>
    %c0_1 = arith.constant 0 : index
    %c0_2 = arith.constant 0 : index
    %1 = vector.load %arg1[%c0_1, %c0_2] : memref<8x16xf32, #tpu.memory_space<vmem>>, vector<8x16xf32>
    %c0_3 = arith.constant 0 : index
    %c0_4 = arith.constant 0 : index
    %2 = vector.load %arg4[%c0_3, %c0_4] : memref<16x64xf32, #tpu.memory_space<vmem>>, vector<16x64xf32>
    %cst = arith.constant dense<0.000000e+00> : vector<8x64xf32>
    %3 = tpu.matmul %1, %2, %cst {dimension_numbers = #tpu.dot_dimension_numbers<[1], [0], [0], [1], [0, 0, 1, 1], [], []>} : vector<8x16xf32>, vector<16x64xf32>, vector<8x64xf32> -> vector<8x64xf32>
    %c0_5 = arith.constant 0 : index
    %c0_6 = arith.constant 0 : index
    %4 = vector.load %arg2[%c0_5, %c0_6] : memref<8x4xf32, #tpu.memory_space<vmem>>, vector<8x4xf32>
    %c0_7 = arith.constant 0 : index
    %c0_8 = arith.constant 0 : index
    %5 = vector.load %arg5[%c0_7, %c0_8] : memref<4x64xf32, #tpu.memory_space<vmem>>, vector<4x64xf32>
    %cst_9 = arith.constant dense<0.000000e+00> : vector<8x64xf32>
    %6 = tpu.matmul %4, %5, %cst_9 {dimension_numbers = #tpu.dot_dimension_numbers<[1], [0], [0], [1], [0, 0, 1, 1], [], []>} : vector<8x4xf32>, vector<4x64xf32>, vector<8x64xf32> -> vector<8x64xf32>
    %7 = arith.addf %3, %6 : vector<8x64xf32>
    %c0_10 = arith.constant 0 : index
    %c0_11 = arith.constant 0 : index
    %8 = vector.load %arg6[%c0_10, %c0_11] : memref<1x64xf32, #tpu.memory_space<vmem>>, vector<1x64xf32>
    %9 = vector.broadcast %8 : vector<1x64xf32> to vector<8x64xf32>
    %10 = arith.addf %7, %9 : vector<8x64xf32>
    %cst_12 = arith.constant 0.000000e+00 : f32
    %11 = vector.broadcast %cst_12 : f32 to vector<8x64xf32>
    %12 = arith.maximumf %10, %11 : vector<8x64xf32>
    %13 = vector.extract_strided_slice %12 {offsets = [0, 0], sizes = [8, 32], strides = [1, 1]} : vector<8x64xf32> to vector<8x32xf32>
    %c0_13 = arith.constant 0 : index
    %c0_14 = arith.constant 0 : index
    %14 = vector.load %arg7[%c0_13, %c0_14] : memref<32x32xf32, #tpu.memory_space<vmem>>, vector<32x32xf32>
    %cst_15 = arith.constant dense<0.000000e+00> : vector<8x32xf32>
    %15 = tpu.matmul %13, %14, %cst_15 {dimension_numbers = #tpu.dot_dimension_numbers<[1], [0], [0], [1], [0, 0, 1, 1], [], []>} : vector<8x32xf32>, vector<32x32xf32>, vector<8x32xf32> -> vector<8x32xf32>
    %c0_16 = arith.constant 0 : index
    %c0_17 = arith.constant 0 : index
    %16 = vector.load %arg9[%c0_16, %c0_17] : memref<1x64xf32, #tpu.memory_space<vmem>>, vector<1x32xf32>
    %17 = vector.broadcast %16 : vector<1x32xf32> to vector<8x32xf32>
    %18 = arith.addf %15, %17 : vector<8x32xf32>
    %cst_18 = arith.constant 0.000000e+00 : f32
    %19 = vector.broadcast %cst_18 : f32 to vector<8x32xf32>
    %20 = arith.maximumf %18, %19 : vector<8x32xf32>
    %21 = vector.extract_strided_slice %12 {offsets = [0, 32], sizes = [8, 32], strides = [1, 1]} : vector<8x64xf32> to vector<8x32xf32>
    %c0_19 = arith.constant 0 : index
    %c0_20 = arith.constant 0 : index
    %22 = vector.load %arg8[%c0_19, %c0_20] : memref<32x32xf32, #tpu.memory_space<vmem>>, vector<32x32xf32>
    %cst_21 = arith.constant dense<0.000000e+00> : vector<8x32xf32>
    %23 = tpu.matmul %21, %22, %cst_21 {dimension_numbers = #tpu.dot_dimension_numbers<[1], [0], [0], [1], [0, 0, 1, 1], [], []>} : vector<8x32xf32>, vector<32x32xf32>, vector<8x32xf32> -> vector<8x32xf32>
    %c0_22 = arith.constant 0 : index
    %c32 = arith.constant 32 : index
    %24 = vector.load %arg9[%c0_22, %c32] : memref<1x64xf32, #tpu.memory_space<vmem>>, vector<1x32xf32>
    %25 = vector.broadcast %24 : vector<1x32xf32> to vector<8x32xf32>
    %26 = arith.addf %23, %25 : vector<8x32xf32>
    %cst_23 = arith.constant 0.000000e+00 : f32
    %27 = vector.broadcast %cst_23 : f32 to vector<8x32xf32>
    %28 = arith.maximumf %26, %27 : vector<8x32xf32>
    %c0_24 = arith.constant 0 : index
    %c0_25 = arith.constant 0 : index
    %29 = vector.load %arg10[%c0_24, %c0_25] : memref<32x8xf32, #tpu.memory_space<vmem>>, vector<32x8xf32>
    %cst_26 = arith.constant dense<0.000000e+00> : vector<8x8xf32>
    %30 = tpu.matmul %20, %29, %cst_26 {dimension_numbers = #tpu.dot_dimension_numbers<[1], [0], [0], [1], [0, 0, 1, 1], [], []>} : vector<8x32xf32>, vector<32x8xf32>, vector<8x8xf32> -> vector<8x8xf32>
    %c0_27 = arith.constant 0 : index
    %c0_28 = arith.constant 0 : index
    %31 = vector.load %arg11[%c0_27, %c0_28] : memref<1x8xf32, #tpu.memory_space<vmem>>, vector<1x8xf32>
    %32 = vector.broadcast %31 : vector<1x8xf32> to vector<8x8xf32>
    %33 = arith.addf %30, %32 : vector<8x8xf32>
    %c0_29 = arith.constant 0 : index
    %c0_30 = arith.constant 0 : index
    %34 = vector.load %arg12[%c0_29, %c0_30] : memref<32x8xf32, #tpu.memory_space<vmem>>, vector<32x8xf32>
    %cst_31 = arith.constant dense<0.000000e+00> : vector<8x8xf32>
    %35 = tpu.matmul %28, %34, %cst_31 {dimension_numbers = #tpu.dot_dimension_numbers<[1], [0], [0], [1], [0, 0, 1, 1], [], []>} : vector<8x32xf32>, vector<32x8xf32>, vector<8x8xf32> -> vector<8x8xf32>
    %c0_32 = arith.constant 0 : index
    %c0_33 = arith.constant 0 : index
    %36 = vector.load %arg13[%c0_32, %c0_33] : memref<1x8xf32, #tpu.memory_space<vmem>>, vector<1x8xf32>
    %37 = vector.broadcast %36 : vector<1x8xf32> to vector<8x8xf32>
    %38 = arith.addf %35, %37 : vector<8x8xf32>
    %39 = vector.extract_strided_slice %33 {offsets = [0, 0], sizes = [8, 4], strides = [1, 1]} : vector<8x8xf32> to vector<8x4xf32>
    %40 = vector.extract_strided_slice %33 {offsets = [0, 4], sizes = [8, 4], strides = [1, 1]} : vector<8x8xf32> to vector<8x4xf32>
    %cst_34 = arith.constant -4.000000e+00 : f32
    %cst_35 = arith.constant 1.500000e+01 : f32
    %41 = vector.broadcast %cst_34 : f32 to vector<8x4xf32>
    %42 = arith.maximumf %41, %40 : vector<8x4xf32>
    %43 = vector.broadcast %cst_35 : f32 to vector<8x4xf32>
    %44 = arith.minimumf %43, %42 : vector<8x4xf32>
    %cst_36 = arith.constant -2.000000e+00 : f32
    %45 = vector.broadcast %cst_36 : f32 to vector<8x4xf32>
    %46 = arith.mulf %45, %44 : vector<8x4xf32>
    %47 = math.exp %46 : vector<8x4xf32>
    %48 = arith.subf %0, %39 : vector<8x4xf32>
    %49 = arith.mulf %48, %48 : vector<8x4xf32>
    %cst_37 = arith.constant -5.000000e-01 : f32
    %50 = vector.broadcast %cst_37 : f32 to vector<8x4xf32>
    %51 = arith.mulf %50, %49 : vector<8x4xf32>
    %52 = arith.mulf %51, %47 : vector<8x4xf32>
    %53 = arith.subf %52, %44 : vector<8x4xf32>
    %cst_38 = arith.constant 0.918938517 : f32
    %54 = vector.broadcast %cst_38 : f32 to vector<8x4xf32>
    %55 = arith.subf %53, %54 : vector<8x4xf32>
    %cst_39 = arith.constant dense<0.000000e+00> : vector<8xf32>
    %56 = vector.multi_reduction <add>, %55, %cst_39 [1] : vector<8x4xf32> to vector<8xf32>
    %57 = vector.shape_cast %56 : vector<8xf32> to vector<8x1xf32>
    %cst_40 = arith.constant 0.000000e+00 : f32
    %58 = vector.broadcast %cst_40 : f32 to vector<8x1xf32>
    %59 = arith.subf %58, %57 : vector<8x1xf32>
    %cst_41 = arith.constant dense<0xFF800000> : vector<8xf32>
    %60 = vector.multi_reduction <maximumf>, %38, %cst_41 [1] : vector<8x8xf32> to vector<8xf32>
    %61 = vector.shape_cast %60 : vector<8xf32> to vector<8x1xf32>
    %62 = vector.broadcast %61 : vector<8x1xf32> to vector<8x8xf32>
    %63 = arith.subf %38, %62 : vector<8x8xf32>
    %64 = math.exp %63 : vector<8x8xf32>
    %cst_42 = arith.constant dense<0.000000e+00> : vector<8xf32>
    %65 = vector.multi_reduction <add>, %64, %cst_42 [1] : vector<8x8xf32> to vector<8xf32>
    %66 = vector.shape_cast %65 : vector<8xf32> to vector<8x1xf32>
    %67 = math.log %66 : vector<8x1xf32>
    %68 = arith.addf %61, %67 : vector<8x1xf32>
    %69 = tpu.iota {dimensions = array<i32: 1>} : vector<8x8xi32>
    %c0_43 = arith.constant 0 : index
    %c0_44 = arith.constant 0 : index
    %70 = vector.load %arg3[%c0_43, %c0_44] : memref<8x1xi32, #tpu.memory_space<vmem>>, vector<8x1xi32>
    %71 = vector.broadcast %70 : vector<8x1xi32> to vector<8x8xi32>
    %72 = arith.cmpi eq, %69, %71 : vector<8x8xi32>
    %73 = arith.extui %72 : vector<8x8xi1> to vector<8x8xi32>
    %74 = arith.sitofp %73 : vector<8x8xi32> to vector<8x8xf32>
    %75 = arith.mulf %38, %74 : vector<8x8xf32>
    %cst_45 = arith.constant dense<0.000000e+00> : vector<8xf32>
    %76 = vector.multi_reduction <add>, %75, %cst_45 [1] : vector<8x8xf32> to vector<8xf32>
    %77 = vector.shape_cast %76 : vector<8xf32> to vector<8x1xf32>
    %78 = arith.subf %68, %77 : vector<8x1xf32>
    %c0_46 = arith.constant 0 : index
    %c0_47 = arith.constant 0 : index
    %79 = vector.load %arg14[%c0_46, %c0_47] : memref<8x2xf32, #tpu.memory_space<vmem>>, vector<8x1xf32>
    tpu.vector_store %arg14[%c0_46, %c0_47], %59 {strides = array<i32>} : memref<8x2xf32, #tpu.memory_space<vmem>>, vector<8x1xf32>,
    %c0_48 = arith.constant 0 : index
    %c1 = arith.constant 1 : index
    %80 = vector.load %arg14[%c0_48, %c1] : memref<8x2xf32, #tpu.memory_space<vmem>>, vector<8x1xf32>
    tpu.vector_store %arg14[%c0_48, %c1], %78 {strides = array<i32>} : memref<8x2xf32, #tpu.memory_space<vmem>>, vector<8x1xf32>,
    return
  }
  func.func @transform_0(%arg0: i32) -> (i32, i32) {
    %c0_i32 = arith.constant 0 : i32
    %c0_i32_0 = arith.constant 0 : i32
    return %arg0, %c0_i32 : i32, i32
  }
  func.func @transform_1(%arg0: i32) -> (i32, i32) {
    %c0_i32 = arith.constant 0 : i32
    %c0_i32_0 = arith.constant 0 : i32
    return %arg0, %c0_i32 : i32, i32
  }
  func.func @transform_2(%arg0: i32) -> (i32, i32) {
    %c0_i32 = arith.constant 0 : i32
    %c0_i32_0 = arith.constant 0 : i32
    return %arg0, %c0_i32 : i32, i32
  }
  func.func @transform_3(%arg0: i32) -> (i32, i32) {
    %c0_i32 = arith.constant 0 : i32
    %c0_i32_0 = arith.constant 0 : i32
    %c0_i32_1 = arith.constant 0 : i32
    return %c0_i32, %c0_i32_0 : i32, i32
  }
  func.func @transform_4(%arg0: i32) -> (i32, i32) {
    %c0_i32 = arith.constant 0 : i32
    %c0_i32_0 = arith.constant 0 : i32
    %c0_i32_1 = arith.constant 0 : i32
    return %c0_i32, %c0_i32_0 : i32, i32
  }
  func.func @transform_5(%arg0: i32) -> (i32, i32) {
    %c0_i32 = arith.constant 0 : i32
    %c0_i32_0 = arith.constant 0 : i32
    %c0_i32_1 = arith.constant 0 : i32
    return %c0_i32, %c0_i32_0 : i32, i32
  }
  func.func @transform_6(%arg0: i32) -> (i32, i32) {
    %c0_i32 = arith.constant 0 : i32
    %c0_i32_0 = arith.constant 0 : i32
    %c0_i32_1 = arith.constant 0 : i32
    return %c0_i32, %c0_i32_0 : i32, i32
  }
  func.func @transform_7(%arg0: i32) -> (i32, i32) {
    %c0_i32 = arith.constant 0 : i32
    %c0_i32_0 = arith.constant 0 : i32
    %c0_i32_1 = arith.constant 0 : i32
    return %c0_i32, %c0_i32_0 : i32, i32
  }
  func.func @transform_8(%arg0: i32) -> (i32, i32) {
    %c0_i32 = arith.constant 0 : i32
    %c0_i32_0 = arith.constant 0 : i32
    %c0_i32_1 = arith.constant 0 : i32
    return %c0_i32, %c0_i32_0 : i32, i32
  }
  func.func @transform_9(%arg0: i32) -> (i32, i32) {
    %c0_i32 = arith.constant 0 : i32
    %c0_i32_0 = arith.constant 0 : i32
    %c0_i32_1 = arith.constant 0 : i32
    return %c0_i32, %c0_i32_0 : i32, i32
  }
  func.func @transform_10(%arg0: i32) -> (i32, i32) {
    %c0_i32 = arith.constant 0 : i32
    %c0_i32_0 = arith.constant 0 : i32
    %c0_i32_1 = arith.constant 0 : i32
    return %c0_i32, %c0_i32_0 : i32, i32
  }
  func.func @transform_11(%arg0: i32) -> (i32, i32) {
    %c0_i32 = arith.constant 0 : i32
    %c0_i32_0 = arith.constant 0 : i32
    %c0_i32_1 = arith.constant 0 : i32
    return %c0_i32, %c0_i32_0 : i32, i32
  }
  func.func @transform_12(%arg0: i32) -> (i32, i32) {
    %c0_i32 = arith.constant 0 : i32
    %c0_i32_0 = arith.constant 0 : i32
    %c0_i32_1 = arith.constant 0 : i32
    return %c0_i32, %c0_i32_0 : i32, i32
  }
  func.func @transform_13(%arg0: i32) -> (i32, i32) {
    %c0_i32 = arith.constant 0 : i32
    %c0_i32_0 = arith.constant 0 : i32
    return %arg0, %c0_i32 : i32, i32
  }
}

</mosaic_0001>

<llo_original>
// kernel: tpu_custom_call.1
$region0: #{tpu_custom_call.1}
  #allocation0 [shape = 'u32[]', space=smem, size = 0x4, offset = 0x4, fixed_abs, tag = 'smem constant byte address 0x4 - core index']
  #allocation1 [shape = 'u32[144,128]{1,0:T(1,128)}', space=vmem, size = 0x12000, scoped, tag = 'internal scratch']
  %s0 = inlined_call_operand.hbm [shape: f32[8,16], index: 0, kind: input, shape index: {}]
  %s1 = inlined_call_operand.vmem [shape: f32[8,4], index: 1, kind: input, shape index: {}]
  %s2 = inlined_call_operand.vmem [shape: s32[8,1], index: 2, kind: input, shape index: {}]
  %s3 = inlined_call_operand.vmem [shape: f32[16,64], index: 3, kind: input, shape index: {}]
  %s4 = inlined_call_operand.vmem [shape: f32[4,64], index: 4, kind: input, shape index: {}]
  %s5 = inlined_call_operand.vmem [shape: f32[1,64], index: 5, kind: input, shape index: {}]
  %s6 = inlined_call_operand.vmem [shape: f32[32,32], index: 6, kind: input, shape index: {}]
  %s7 = inlined_call_operand.vmem [shape: f32[32,32], index: 7, kind: input, shape index: {}]
  %s8 = inlined_call_operand.vmem [shape: f32[1,64], index: 8, kind: input, shape index: {}]
  %s9 = inlined_call_operand.vmem [shape: f32[32,8], index: 9, kind: input, shape index: {}]
  %s10 = inlined_call_operand.vmem [shape: f32[1,8], index: 10, kind: input, shape index: {}]
  %s11 = inlined_call_operand.vmem [shape: f32[32,8], index: 11, kind: input, shape index: {}]
  %s12 = inlined_call_operand.vmem [shape: f32[1,8], index: 12, kind: input, shape index: {}]
  %s13 = inlined_call_operand.vmem [shape: f32[8,2], index: 13, kind: output, shape index: {}]
  %s14 = sld [smem:[#allocation0]]
  $region66: #{tpu_custom_call.1} parent=0
    _
  %s16 = ssub.s32 1, %s14
  %s17 = scalar_select 0, %s16, %s14
  $region1: #{tpu_custom_call.1} parent=0
    #allocation2 [shape = 'u8[4096]{0}', space=vmem, size = 0x1000, scoped, tag = 'input window, operand 0, single buffered']
    #allocation3 [shape = 's32[1]{0}', space=sflag, size = 0x4, scoped, tag = 'scoped memory for tpu_custom_call.1']
    %18 = vsyncpa [#allocation3], 0
    // Predicated region
    $region2: #{tpu_custom_call.1} parent=1 // pred_check
      _
    $region3: #{tpu_custom_call.1} parent=1 // pred_check_branch
      %20 = sbr.rel (0) target = $region5
    $region4: #{tpu_custom_call.1} parent=1 // pred_region
      %s22 = ssub.s32 128, 128
      %23 = vsyncadd [#allocation3], %s22
      %s25 = sshll.u32 [#allocation2], 4
      %s26 = int_to_ptr.vmem [resolvable:$true] %s25
      %28 = dma.hbm_to_vmem [thread:$0]  %s0, 128, %s26, [#allocation3]
    $region5: #{tpu_custom_call.1} parent=1 // pred_fallthru
      _
    // Predicated region
    $region6: #{tpu_custom_call.1} parent=1 // pred_check
      _
    $region7: #{tpu_custom_call.1} parent=1 // pred_check_branch
      %30 = sbr.rel (0) target = $region9
    $region8: #{tpu_custom_call.1} parent=1 // pred_region
      _
    $region9: #{tpu_custom_call.1} parent=1 // pred_fallthru
      _
    // Predicated region
    $region10: #{tpu_custom_call.1} parent=1 // pred_check
      _
    $region11: #{tpu_custom_call.1} parent=1 // pred_check_branch
      %32 = sbr.rel (0) target = $region13
    $region12: #{tpu_custom_call.1} parent=1 // pred_region
      _
    $region13: #{tpu_custom_call.1} parent=1 // pred_fallthru
      _
    // Predicated region
    $region14: #{tpu_custom_call.1} parent=1 // pred_check
      _
    $region15: #{tpu_custom_call.1} parent=1 // pred_check_branch
      %34 = sbr.rel (0) target = $region17
    $region16: #{tpu_custom_call.1} parent=1 // pred_region
      _
    $region17: #{tpu_custom_call.1} parent=1 // pred_fallthru
      _
    // Predicated region
    $region18: #{tpu_custom_call.1} parent=1 // pred_check
      _
    $region19: #{tpu_custom_call.1} parent=1 // pred_check_branch
      %36 = sbr.rel (0) target = $region21
    $region20: #{tpu_custom_call.1} parent=1 // pred_region
      _
    $region21: #{tpu_custom_call.1} parent=1 // pred_fallthru
      _
    // Predicated region
    $region22: #{tpu_custom_call.1} parent=1 // pred_check
      _
    $region23: #{tpu_custom_call.1} parent=1 // pred_check_branch
      %38 = sbr.rel (0) target = $region25
    $region24: #{tpu_custom_call.1} parent=1 // pred_region
      _
    $region25: #{tpu_custom_call.1} parent=1 // pred_fallthru
      _
    // Predicated region
    $region26: #{tpu_custom_call.1} parent=1 // pred_check
      _
    $region27: #{tpu_custom_call.1} parent=1 // pred_check_branch
      %40 = sbr.rel (0) target = $region29
    $region28: #{tpu_custom_call.1} parent=1 // pred_region
      _
    $region29: #{tpu_custom_call.1} parent=1 // pred_fallthru
      _
    // Predicated region
    $region30: #{tpu_custom_call.1} parent=1 // pred_check
      _
    $region31: #{tpu_custom_call.1} parent=1 // pred_check_branch
      %42 = sbr.rel (0) target = $region33
    $region32: #{tpu_custom_call.1} parent=1 // pred_region
      _
    $region33: #{tpu_custom_call.1} parent=1 // pred_fallthru
      _
    // Predicated region
    $region34: #{tpu_custom_call.1} parent=1 // pred_check
      _
    $region35: #{tpu_custom_call.1} parent=1 // pred_check_branch
      %44 = sbr.rel (0) target = $region37
    $region36: #{tpu_custom_call.1} parent=1 // pred_region
      _
    $region37: #{tpu_custom_call.1} parent=1 // pred_fallthru
      _
    // Predicated region
    $region38: #{tpu_custom_call.1} parent=1 // pred_check
      _
    $region39: #{tpu_custom_call.1} parent=1 // pred_check_branch
      %46 = sbr.rel (0) target = $region41
    $region40: #{tpu_custom_call.1} parent=1 // pred_region
      _
    $region41: #{tpu_custom_call.1} parent=1 // pred_fallthru
      _
    // Predicated region
    $region42: #{tpu_custom_call.1} parent=1 // pred_check
      _
    $region43: #{tpu_custom_call.1} parent=1 // pred_check_branch
      %48 = sbr.rel (0) target = $region45
    $region44: #{tpu_custom_call.1} parent=1 // pred_region
      _
    $region45: #{tpu_custom_call.1} parent=1 // pred_fallthru
      _
    // Predicated region
    $region46: #{tpu_custom_call.1} parent=1 // pred_check
      _
    $region47: #{tpu_custom_call.1} parent=1 // pred_check_branch
      %50 = sbr.rel (0) target = $region49
    $region48: #{tpu_custom_call.1} parent=1 // pred_region
      _
    $region49: #{tpu_custom_call.1} parent=1 // pred_fallthru
      _
    // Predicated region
    $region50: #{tpu_custom_call.1} parent=1 // pred_check
      _
    $region51: #{tpu_custom_call.1} parent=1 // pred_check_branch
      %52 = sbr.rel (0) target = $region53
    $region52: #{tpu_custom_call.1} parent=1 // pred_region
      _
    $region53: #{tpu_custom_call.1} parent=1 // pred_fallthru
      _
    // Predicated region
    $region54: #{tpu_custom_call.1} parent=1 // pred_check
      _
    $region55: #{tpu_custom_call.1} parent=1 // pred_check_branch
      %54 = sbr.rel (0) target = $region57
    $region56: #{tpu_custom_call.1} parent=1 // pred_region
      %55 = dma.done [#allocation3], 128
    $region57: #{tpu_custom_call.1} parent=1 // pred_fallthru
      _
    %v56 = vld [vmem:[%s1] sm:$0xff]
    %v57 = vld [vmem:[#allocation2] sm:$0xff]
    %v58 = vld [vmem:[%s3] sm:$0xff]
    %v59 = vld [vmem:[%s3 + $0x8] sm:$0xff]
    %v60 = vld [vmem:[%s4] sm:$0xf]
    %vm61 = vcmask 31744
    %v63 = vsel %vm61, %v56, 0
    %vm65 = vcmask 1043456
    %v67 = vsel %vm65, %v60, 0
    %69 = vmatprep.subr.mxu0 0.0
    %70 = vmatpush1.msra.mxu0 0.0
    %71 = vmatprep.subr.mxu0 0.0
    %72 = vmatpush1.msra.mxu0 0.0
    %73 = vmatprep.subr.mxu0 0.0
    %74 = vmatpush1.msra.mxu0 0.0
    %75 = vmatprep.subr.mxu0 0.0
    %76 = vmatpush1.msra.mxu0 0.0
    %77 = vmatprep.subr.mxu0 0.0
    %78 = vmatpush1.msra.mxu0 0.0
    %79 = vmatprep.subr.mxu0 0.0
    %80 = vmatpush1.msra.mxu0 0.0
    %81 = vmatprep.subr.mxu0 0.0
    %82 = vmatpush1.msra.mxu0 0.0
    %83 = vmatprep.subr.mxu0 0.0
    %84 = vmatpush1.msra.mxu0 0.0
    %85 = vmatprep.subr.mxu0 0.0
    %86 = vmatpush1.msra.mxu0 0.0
    %87 = vmatprep.subr.mxu0 0.0
    %88 = vmatpush1.msra.mxu0 0.0
    %89 = vmatprep.subr.mxu0 0.0
    %90 = vmatpush1.msra.mxu0 0.0
    %91 = vmatprep.subr.mxu0 0.0
    %92 = vmatpush1.msra.mxu0 0.0
    %93 = vmatprep.subr.mxu0 0.0
    %94 = vmatpush1.msra.mxu0 0.0
    %95 = vmatprep.subr.mxu0 0.0
    %96 = vmatpush1.msra.mxu0 0.0
    %97 = vmatprep.subr.mxu0 0.0
    %98 = vmatpush1.msra.mxu0 0.0
    %99 = vmatprep.subr.mxu0 0.0
    %100 = vmatpush1.msra.mxu0 %v67
    %101 = vmatprep.subr.mxu0 0.0
    %102 = vmatpush2.msra.mxu0 0.0
    %103 = vmatprep.subr.mxu0 0.0
    %104 = vmatpush2.msra.mxu0 0.0
    %105 = vmatprep.subr.mxu0 0.0
    %106 = vmatpush2.msra.mxu0 0.0
    %107 = vmatprep.subr.mxu0 0.0
    %108 = vmatpush2.msra.mxu0 0.0
    %109 = vmatprep.subr.mxu0 0.0
    %110 = vmatpush2.msra.mxu0 0.0
    %111 = vmatprep.subr.mxu0 0.0
    %112 = vmatpush2.msra.mxu0 0.0
    %113 = vmatprep.subr.mxu0 0.0
    %114 = vmatpush2.msra.mxu0 0.0
    %115 = vmatprep.subr.mxu0 0.0
    %116 = vmatpush2.msra.mxu0 0.0
    %117 = vmatprep.subr.mxu0 0.0
    %118 = vmatpush2.msra.mxu0 0.0
    %119 = vmatprep.subr.mxu0 0.0
    %120 = vmatpush2.msra.mxu0 0.0
    %121 = vmatprep.subr.mxu0 0.0
    %122 = vmatpush2.msra.mxu0 0.0
    %123 = vmatprep.subr.mxu0 0.0
    %124 = vmatpush2.msra.mxu0 0.0
    %125 = vmatprep.subr.mxu0 0.0
    %126 = vmatpush2.msra.mxu0 0.0
    %127 = vmatprep.subr.mxu0 0.0
    %128 = vmatpush2.msra.mxu0 0.0
    %129 = vmatprep.subr.mxu0 0.0
    %130 = vmatpush2.msra.mxu0 0.0
    %131 = vmatprep.subr.mxu0 0.0
    %132 = vmatpush2.msra.mxu0 0.0
    %133 = vmatprep.mubr.f32.mxu0 0.0
    %134 = vmatmul.mubr.f32.gmra.mxu0 %v63
    %v135 = vpop.f32.mrf.mxu0
    %v136 = vadd.f32 0.0, %v135
    %v137 = vpop.f32.mrf.mxu0
    %138 = vdwg.mxu0
    %vm139 = vcmask 130048
    %v141 = vsel %vm139, %v57, 0
    %143 = vmatprep.subr.mxu0 0.0
    %144 = vmatpush1.msra.mxu0 0.0
    %145 = vmatprep.subr.mxu0 0.0
    %146 = vmatpush1.msra.mxu0 0.0
    %147 = vmatprep.subr.mxu0 0.0
    %148 = vmatpush1.msra.mxu0 0.0
    %149 = vmatprep.subr.mxu0 0.0
    %150 = vmatpush1.msra.mxu0 0.0
    %151 = vmatprep.subr.mxu0 0.0
    %152 = vmatpush1.msra.mxu0 0.0
    %153 = vmatprep.subr.mxu0 0.0
    %154 = vmatpush1.msra.mxu0 0.0
    %155 = vmatprep.subr.mxu0 0.0
    %156 = vmatpush1.msra.mxu0 0.0
    %157 = vmatprep.subr.mxu0 0.0
    %158 = vmatpush1.msra.mxu0 0.0
    %159 = vmatprep.subr.mxu0 0.0
    %160 = vmatpush1.msra.mxu0 0.0
    %161 = vmatprep.subr.mxu0 0.0
    %162 = vmatpush1.msra.mxu0 0.0
    %163 = vmatprep.subr.mxu0 0.0
    %164 = vmatpush1.msra.mxu0 0.0
    %165 = vmatprep.subr.mxu0 0.0
    %166 = vmatpush1.msra.mxu0 0.0
    %167 = vmatprep.subr.mxu0 0.0
    %168 = vmatpush1.msra.mxu0 0.0
    %169 = vmatprep.subr.mxu0 0.0
    %170 = vmatpush1.msra.mxu0 0.0
    %171 = vmatprep.subr.mxu0 0.0
    %172 = vmatpush1.msra.mxu0 %v59
    %173 = vmatprep.subr.mxu0 0.0
    %174 = vmatpush1.msra.mxu0 %v58
    %175 = vmatprep.subr.mxu0 0.0
    %176 = vmatpush2.msra.mxu0 0.0
    %177 = vmatprep.subr.mxu0 0.0
    %178 = vmatpush2.msra.mxu0 0.0
    %179 = vmatprep.subr.mxu0 0.0
    %180 = vmatpush2.msra.mxu0 0.0
    %181 = vmatprep.subr.mxu0 0.0
    %182 = vmatpush2.msra.mxu0 0.0
    %183 = vmatprep.subr.mxu0 0.0
    %184 = vmatpush2.msra.mxu0 0.0
    %185 = vmatprep.subr.mxu0 0.0
    %186 = vmatpush2.msra.mxu0 0.0
    %187 = vmatprep.subr.mxu0 0.0
    %188 = vmatpush2.msra.mxu0 0.0
    %189 = vmatprep.subr.mxu0 0.0
    %190 = vmatpush2.msra.mxu0 0.0
    %191 = vmatprep.subr.mxu0 0.0
    %192 = vmatpush2.msra.mxu0 0.0
    %193 = vmatprep.subr.mxu0 0.0
    %194 = vmatpush2.msra.mxu0 0.0
    %195 = vmatprep.subr.mxu0 0.0
    %196 = vmatpush2.msra.mxu0 0.0
    %197 = vmatprep.subr.mxu0 0.0
    %198 = vmatpush2.msra.mxu0 0.0
    %199 = vmatprep.subr.mxu0 0.0
    %200 = vmatpush2.msra.mxu0 0.0
    %201 = vmatprep.subr.mxu0 0.0
    %202 = vmatpush2.msra.mxu0 0.0
    %203 = vmatprep.subr.mxu0 0.0
    %204 = vmatpush2.msra.mxu0 0.0
    %205 = vmatprep.subr.mxu0 0.0
    %206 = vmatpush2.msra.mxu0 0.0
    %207 = vmatprep.mubr.f32.mxu0 0.0
    %208 = vmatmul.mubr.f32.gmra.mxu0 %v141
    %v209 = vpop.f32.mrf.mxu0
    %v210 = vadd.f32 %v136, %v209
    %v211 = vpop.f32.mrf.mxu0
    %212 = vdwg.mxu0
    %v213 = vld [vmem:[%s5] sm:$0x1]
    %v215 = vlaneseq
    %v216 = vshrl.u32 %v215, 7
    %v217 = vsub.s32 0, %v216
    %v218 = vrot.slane %v213, %v217
    %v220 = vadd.f32 %v210, %v218
    %v221 = vmax.f32 %v220, 0.0
    %v222 = vld [vmem:[%s6] sm:$0xff]
    %v223 = vld [vmem:[%s6 + $0x8] sm:$0xff]
    %v224 = vld [vmem:[%s6 + $0x10] sm:$0xff]
    %v225 = vld [vmem:[%s6 + $0x18] sm:$0xff]
    %v226 = vld [vmem:[%s8] sm:$0x1]
    %v228 = vlaneseq
    %v229 = vshrl.u32 %v228, 7
    %v230 = vsub.s32 0, %v229
    %v231 = vrot.slane %v226, %v230
    %vm233 = vcmask 261120
    %v235 = vsel %vm233, %v221, 0
    %237 = vmatprep.subr.mxu0 0.0
    %238 = vmatpush1.msra.mxu0 0.0
    %239 = vmatprep.subr.mxu0 0.0
    %240 = vmatpush1.msra.mxu0 0.0
    %241 = vmatprep.subr.mxu0 0.0
    %242 = vmatpush1.msra.mxu0 0.0
    %243 = vmatprep.subr.mxu0 0.0
    %244 = vmatpush1.msra.mxu0 0.0
    %245 = vmatprep.subr.mxu0 0.0
    %246 = vmatpush1.msra.mxu0 0.0
    %247 = vmatprep.subr.mxu0 0.0
    %248 = vmatpush1.msra.mxu0 0.0
    %249 = vmatprep.subr.mxu0 0.0
    %250 = vmatpush1.msra.mxu0 0.0
    %251 = vmatprep.subr.mxu0 0.0
    %252 = vmatpush1.msra.mxu0 0.0
    %253 = vmatprep.subr.mxu0 0.0
    %254 = vmatpush1.msra.mxu0 0.0
    %255 = vmatprep.subr.mxu0 0.0
    %256 = vmatpush1.msra.mxu0 0.0
    %257 = vmatprep.subr.mxu0 0.0
    %258 = vmatpush1.msra.mxu0 0.0
    %259 = vmatprep.subr.mxu0 0.0
    %260 = vmatpush1.msra.mxu0 0.0
    %261 = vmatprep.subr.mxu0 0.0
    %262 = vmatpush1.msra.mxu0 %v225
    %263 = vmatprep.subr.mxu0 0.0
    %264 = vmatpush1.msra.mxu0 %v224
    %265 = vmatprep.subr.mxu0 0.0
    %266 = vmatpush1.msra.mxu0 %v223
    %267 = vmatprep.subr.mxu0 0.0
    %268 = vmatpush1.msra.mxu0 %v222
    %269 = vmatprep.subr.mxu0 0.0
    %270 = vmatpush2.msra.mxu0 0.0
    %271 = vmatprep.subr.mxu0 0.0
    %272 = vmatpush2.msra.mxu0 0.0
    %273 = vmatprep.subr.mxu0 0.0
    %274 = vmatpush2.msra.mxu0 0.0
    %275 = vmatprep.subr.mxu0 0.0
    %276 = vmatpush2.msra.mxu0 0.0
    %277 = vmatprep.subr.mxu0 0.0
    %278 = vmatpush2.msra.mxu0 0.0
    %279 = vmatprep.subr.mxu0 0.0
    %280 = vmatpush2.msra.mxu0 0.0
    %281 = vmatprep.subr.mxu0 0.0
    %282 = vmatpush2.msra.mxu0 0.0
    %283 = vmatprep.subr.mxu0 0.0
    %284 = vmatpush2.msra.mxu0 0.0
    %285 = vmatprep.subr.mxu0 0.0
    %286 = vmatpush2.msra.mxu0 0.0
    %287 = vmatprep.subr.mxu0 0.0
    %288 = vmatpush2.msra.mxu0 0.0
    %289 = vmatprep.subr.mxu0 0.0
    %290 = vmatpush2.msra.mxu0 0.0
    %291 = vmatprep.subr.mxu0 0.0
    %292 = vmatpush2.msra.mxu0 0.0
    %293 = vmatprep.subr.mxu0 0.0
    %294 = vmatpush2.msra.mxu0 0.0
    %295 = vmatprep.subr.mxu0 0.0
    %296 = vmatpush2.msra.mxu0 0.0
    %297 = vmatprep.subr.mxu0 0.0
    %298 = vmatpush2.msra.mxu0 0.0
    %299 = vmatprep.subr.mxu0 0.0
    %300 = vmatpush2.msra.mxu0 0.0
    %301 = vmatprep.mubr.f32.mxu0 0.0
    %302 = vmatmul.mubr.f32.gmra.mxu0 %v235
    %v303 = vpop.f32.mrf.mxu0
    %v304 = vadd.f32 %v231, %v303
    %v305 = vpop.f32.mrf.mxu0
    %306 = vdwg.mxu0
    %v307 = vmax.f32 %v304, 0.0
    %v308 = vld [vmem:[%s7] sm:$0xff]
    %v309 = vld [vmem:[%s7 + $0x8] sm:$0xff]
    %v310 = vld [vmem:[%s7 + $0x10] sm:$0xff]
    %v311 = vld [vmem:[%s7 + $0x18] sm:$0xff]
    %312 = vrot.lane.b32.xlu0 %v221, 96
    %v313 = vpop.permute.xlu0 %312
    %314 = vrot.lane.b32.xlu0 %v231, 96
    %v315 = vpop.permute.xlu0 %314
    %v317 = vsel %vm233, %v313, 0
    %319 = vmatprep.subr.mxu0 0.0
    %320 = vmatpush1.msra.mxu0 0.0
    %321 = vmatprep.subr.mxu0 0.0
    %322 = vmatpush1.msra.mxu0 0.0
    %323 = vmatprep.subr.mxu0 0.0
    %324 = vmatpush1.msra.mxu0 0.0
    %325 = vmatprep.subr.mxu0 0.0
    %326 = vmatpush1.msra.mxu0 0.0
    %327 = vmatprep.subr.mxu0 0.0
    %328 = vmatpush1.msra.mxu0 0.0
    %329 = vmatprep.subr.mxu0 0.0
    %330 = vmatpush1.msra.mxu0 0.0
    %331 = vmatprep.subr.mxu0 0.0
    %332 = vmatpush1.msra.mxu0 0.0
    %333 = vmatprep.subr.mxu0 0.0
    %334 = vmatpush1.msra.mxu0 0.0
    %335 = vmatprep.subr.mxu0 0.0
    %336 = vmatpush1.msra.mxu0 0.0
    %337 = vmatprep.subr.mxu0 0.0
    %338 = vmatpush1.msra.mxu0 0.0
    %339 = vmatprep.subr.mxu0 0.0
    %340 = vmatpush1.msra.mxu0 0.0
    %341 = vmatprep.subr.mxu0 0.0
    %342 = vmatpush1.msra.mxu0 0.0
    %343 = vmatprep.subr.mxu0 0.0
    %344 = vmatpush1.msra.mxu0 %v311
    %345 = vmatprep.subr.mxu0 0.0
    %346 = vmatpush1.msra.mxu0 %v310
    %347 = vmatprep.subr.mxu0 0.0
    %348 = vmatpush1.msra.mxu0 %v309
    %349 = vmatprep.subr.mxu0 0.0
    %350 = vmatpush1.msra.mxu0 %v308
    %351 = vmatprep.subr.mxu0 0.0
    %352 = vmatpush2.msra.mxu0 0.0
    %353 = vmatprep.subr.mxu0 0.0
    %354 = vmatpush2.msra.mxu0 0.0
    %355 = vmatprep.subr.mxu0 0.0
    %356 = vmatpush2.msra.mxu0 0.0
    %357 = vmatprep.subr.mxu0 0.0
    %358 = vmatpush2.msra.mxu0 0.0
    %359 = vmatprep.subr.mxu0 0.0
    %360 = vmatpush2.msra.mxu0 0.0
    %361 = vmatprep.subr.mxu0 0.0
    %362 = vmatpush2.msra.mxu0 0.0
    %363 = vmatprep.subr.mxu0 0.0
    %364 = vmatpush2.msra.mxu0 0.0
    %365 = vmatprep.subr.mxu0 0.0
    %366 = vmatpush2.msra.mxu0 0.0
    %367 = vmatprep.subr.mxu0 0.0
    %368 = vmatpush2.msra.mxu0 0.0
    %369 = vmatprep.subr.mxu0 0.0
    %370 = vmatpush2.msra.mxu0 0.0
    %371 = vmatprep.subr.mxu0 0.0
    %372 = vmatpush2.msra.mxu0 0.0
    %373 = vmatprep.subr.mxu0 0.0
    %374 = vmatpush2.msra.mxu0 0.0
    %375 = vmatprep.subr.mxu0 0.0
    %376 = vmatpush2.msra.mxu0 0.0
    %377 = vmatprep.subr.mxu0 0.0
    %378 = vmatpush2.msra.mxu0 0.0
    %379 = vmatprep.subr.mxu0 0.0
    %380 = vmatpush2.msra.mxu0 0.0
    %381 = vmatprep.subr.mxu0 0.0
    %382 = vmatpush2.msra.mxu0 0.0
    %383 = vmatprep.mubr.f32.mxu0 0.0
    %384 = vmatmul.mubr.f32.gmra.mxu0 %v317
    %v385 = vpop.f32.mrf.mxu0
    %v386 = vadd.f32 %v315, %v385
    %v387 = vpop.f32.mrf.mxu0
    %388 = vdwg.mxu0
    %v389 = vmax.f32 %v386, 0.0
    %v390 = vld [vmem:[%s9] sm:$0xff]
    %v391 = vld [vmem:[%s9 + $0x8] sm:$0xff]
    %v392 = vld [vmem:[%s9 + $0x10] sm:$0xff]
    %v393 = vld [vmem:[%s9 + $0x18] sm:$0xff]
    %v394 = vld [vmem:[%s10] sm:$0x1]
    %v396 = vlaneseq
    %v397 = vshrl.u32 %v396, 7
    %v398 = vsub.s32 0, %v397
    %v399 = vrot.slane %v394, %v398
    %v402 = vsel %vm233, %v307, 0
    %404 = vmatprep.subr.mxu0 0.0
    %405 = vmatpush1.msra.mxu0 0.0
    %406 = vmatprep.subr.mxu0 0.0
    %407 = vmatpush1.msra.mxu0 0.0
    %408 = vmatprep.subr.mxu0 0.0
    %409 = vmatpush1.msra.mxu0 0.0
    %410 = vmatprep.subr.mxu0 0.0
    %411 = vmatpush1.msra.mxu0 0.0
    %412 = vmatprep.subr.mxu0 0.0
    %413 = vmatpush1.msra.mxu0 0.0
    %414 = vmatprep.subr.mxu0 0.0
    %415 = vmatpush1.msra.mxu0 0.0
    %416 = vmatprep.subr.mxu0 0.0
    %417 = vmatpush1.msra.mxu0 0.0
    %418 = vmatprep.subr.mxu0 0.0
    %419 = vmatpush1.msra.mxu0 0.0
    %420 = vmatprep.subr.mxu0 0.0
    %421 = vmatpush1.msra.mxu0 0.0
    %422 = vmatprep.subr.mxu0 0.0
    %423 = vmatpush1.msra.mxu0 0.0
    %424 = vmatprep.subr.mxu0 0.0
    %425 = vmatpush1.msra.mxu0 0.0
    %426 = vmatprep.subr.mxu0 0.0
    %427 = vmatpush1.msra.mxu0 0.0
    %428 = vmatprep.subr.mxu0 0.0
    %429 = vmatpush1.msra.mxu0 %v393
    %430 = vmatprep.subr.mxu0 0.0
    %431 = vmatpush1.msra.mxu0 %v392
    %432 = vmatprep.subr.mxu0 0.0
    %433 = vmatpush1.msra.mxu0 %v391
    %434 = vmatprep.subr.mxu0 0.0
    %435 = vmatpush1.msra.mxu0 %v390
    %436 = vmatprep.subr.mxu0 0.0
    %437 = vmatpush2.msra.mxu0 0.0
    %438 = vmatprep.subr.mxu0 0.0
    %439 = vmatpush2.msra.mxu0 0.0
    %440 = vmatprep.subr.mxu0 0.0
    %441 = vmatpush2.msra.mxu0 0.0
    %442 = vmatprep.subr.mxu0 0.0
    %443 = vmatpush2.msra.mxu0 0.0
    %444 = vmatprep.subr.mxu0 0.0
    %445 = vmatpush2.msra.mxu0 0.0
    %446 = vmatprep.subr.mxu0 0.0
    %447 = vmatpush2.msra.mxu0 0.0
    %448 = vmatprep.subr.mxu0 0.0
    %449 = vmatpush2.msra.mxu0 0.0
    %450 = vmatprep.subr.mxu0 0.0
    %451 = vmatpush2.msra.mxu0 0.0
    %452 = vmatprep.subr.mxu0 0.0
    %453 = vmatpush2.msra.mxu0 0.0
    %454 = vmatprep.subr.mxu0 0.0
    %455 = vmatpush2.msra.mxu0 0.0
    %456 = vmatprep.subr.mxu0 0.0
    %457 = vmatpush2.msra.mxu0 0.0
    %458 = vmatprep.subr.mxu0 0.0
    %459 = vmatpush2.msra.mxu0 0.0
    %460 = vmatprep.subr.mxu0 0.0
    %461 = vmatpush2.msra.mxu0 0.0
    %462 = vmatprep.subr.mxu0 0.0
    %463 = vmatpush2.msra.mxu0 0.0
    %464 = vmatprep.subr.mxu0 0.0
    %465 = vmatpush2.msra.mxu0 0.0
    %466 = vmatprep.subr.mxu0 0.0
    %467 = vmatpush2.msra.mxu0 0.0
    %468 = vmatprep.mubr.f32.mxu0 0.0
    %469 = vmatmul.mubr.f32.gmra.mxu0 %v402
    %v470 = vpop.f32.mrf.mxu0
    %v471 = vadd.f32 %v399, %v470
    %v472 = vpop.f32.mrf.mxu0
    %473 = vdwg.mxu0
    %v474 = vld [vmem:[%s11] sm:$0xff]
    %v475 = vld [vmem:[%s11 + $0x8] sm:$0xff]
    %v476 = vld [vmem:[%s11 + $0x10] sm:$0xff]
    %v477 = vld [vmem:[%s11 + $0x18] sm:$0xff]
    %v478 = vld [vmem:[%s12] sm:$0x1]
    %v480 = vlaneseq
    %v481 = vshrl.u32 %v480, 7
    %v482 = vsub.s32 0, %v481
    %v483 = vrot.slane %v478, %v482
    %v486 = vsel %vm233, %v389, 0
    %488 = vmatprep.subr.mxu0 0.0
    %489 = vmatpush1.msra.mxu0 0.0
    %490 = vmatprep.subr.mxu0 0.0
    %491 = vmatpush1.msra.mxu0 0.0
    %492 = vmatprep.subr.mxu0 0.0
    %493 = vmatpush1.msra.mxu0 0.0
    %494 = vmatprep.subr.mxu0 0.0
    %495 = vmatpush1.msra.mxu0 0.0
    %496 = vmatprep.subr.mxu0 0.0
    %497 = vmatpush1.msra.mxu0 0.0
    %498 = vmatprep.subr.mxu0 0.0
    %499 = vmatpush1.msra.mxu0 0.0
    %500 = vmatprep.subr.mxu0 0.0
    %501 = vmatpush1.msra.mxu0 0.0
    %502 = vmatprep.subr.mxu0 0.0
    %503 = vmatpush1.msra.mxu0 0.0
    %504 = vmatprep.subr.mxu0 0.0
    %505 = vmatpush1.msra.mxu0 0.0
    %506 = vmatprep.subr.mxu0 0.0
    %507 = vmatpush1.msra.mxu0 0.0
    %508 = vmatprep.subr.mxu0 0.0
    %509 = vmatpush1.msra.mxu0 0.0
    %510 = vmatprep.subr.mxu0 0.0
    %511 = vmatpush1.msra.mxu0 0.0
    %512 = vmatprep.subr.mxu0 0.0
    %513 = vmatpush1.msra.mxu0 %v477
    %514 = vmatprep.subr.mxu0 0.0
    %515 = vmatpush1.msra.mxu0 %v476
    %516 = vmatprep.subr.mxu0 0.0
    %517 = vmatpush1.msra.mxu0 %v475
    %518 = vmatprep.subr.mxu0 0.0
    %519 = vmatpush1.msra.mxu0 %v474
    %520 = vmatprep.subr.mxu0 0.0
    %521 = vmatpush2.msra.mxu0 0.0
    %522 = vmatprep.subr.mxu0 0.0
    %523 = vmatpush2.msra.mxu0 0.0
    %524 = vmatprep.subr.mxu0 0.0
    %525 = vmatpush2.msra.mxu0 0.0
    %526 = vmatprep.subr.mxu0 0.0
    %527 = vmatpush2.msra.mxu0 0.0
    %528 = vmatprep.subr.mxu0 0.0
    %529 = vmatpush2.msra.mxu0 0.0
    %530 = vmatprep.subr.mxu0 0.0
    %531 = vmatpush2.msra.mxu0 0.0
    %532 = vmatprep.subr.mxu0 0.0
    %533 = vmatpush2.msra.mxu0 0.0
    %534 = vmatprep.subr.mxu0 0.0
    %535 = vmatpush2.msra.mxu0 0.0
    %536 = vmatprep.subr.mxu0 0.0
    %537 = vmatpush2.msra.mxu0 0.0
    %538 = vmatprep.subr.mxu0 0.0
    %539 = vmatpush2.msra.mxu0 0.0
    %540 = vmatprep.subr.mxu0 0.0
    %541 = vmatpush2.msra.mxu0 0.0
    %542 = vmatprep.subr.mxu0 0.0
    %543 = vmatpush2.msra.mxu0 0.0
    %544 = vmatprep.subr.mxu0 0.0
    %545 = vmatpush2.msra.mxu0 0.0
    %546 = vmatprep.subr.mxu0 0.0
    %547 = vmatpush2.msra.mxu0 0.0
    %548 = vmatprep.subr.mxu0 0.0
    %549 = vmatpush2.msra.mxu0 0.0
    %550 = vmatprep.subr.mxu0 0.0
    %551 = vmatpush2.msra.mxu0 0.0
    %552 = vmatprep.mubr.f32.mxu0 0.0
    %553 = vmatmul.mubr.f32.gmra.mxu0 %v486
    %v554 = vpop.f32.mrf.mxu0
    %v555 = vadd.f32 %v483, %v554
    %v556 = vpop.f32.mrf.mxu0
    %557 = vdwg.mxu0
    %v558 = vmax.f32 %v471, -4.0
    %v559 = vmin.f32 %v558, 15.0
    %v560 = vmul.f32 %v559, -2.0
    %v561 = vmul.f32 %v560, 1.442695
    %v562 = vpow.pop %v561
    %v563 = vsub.f32 %v56, %v471
    %v564 = vmul.f32 %v563, %v563
    %v565 = vmul.f32 %v564, -0.5
    %567 = vrot.lane.b32.xlu0 %v562, 124
    %v568 = vpop.permute.xlu0 %567
    %v570 = vmul.f32 %v565, %v568
    %572 = vrot.lane.b32.xlu0 %v559, 124
    %v573 = vpop.permute.xlu0 %572
    %v575 = vsub.f32 %v570, %v573
    %v576 = vsub.f32 %v575, 0.9189385
    %v577 = vsel %vm61, %v576, 0.0
    %578 = vadd.xlane.f32.xlu0 %v577
    %v579 = vpop.xlane.xlu0 %578
    %v580 = vsub.f32 0.0, %v579
    %vm581 = vcmask 64512
    %v582 = vsel %vm581, %v555, -inf
    %583 = vmax.xlane.f32.xlu0 %v582
    %v584 = vpop.xlane.xlu0 %583
    %v585 = vsub.f32 %v555, %v584
    %v586 = vmul.f32 %v585, 1.442695
    %v587 = vpow.pop %v586
    %v588 = vsel %vm581, %v587, 0.0
    %589 = vadd.xlane.f32.xlu0 %v588
    %v590 = vpop.xlane.xlu0 %589
    %v591 = vlog2.pop %v590
    %v592 = vmul.f32 %v591, 0.6931472
    %v593 = vadd.f32 %v584, %v592
    %v594 = vlaneseq
    %v595 = vand.u32 %v594, 127
    %v596 = vld [vmem:[%s2] sm:$0xff]
    %597 = vset.pattern.permute.xlu0 0
    %598 = vperm.xlu0 %597, %v596
    %v599 = vpop.permute.xlu0 %598
    %vm600 = vcmp.eq.s32.totalorder %v595, %v599
    %v601 = vsel %vm600, 1, 0
    %v602 = vcvt.s32.f32 %v601
    %v603 = vmul.f32 %v555, %v602
    %v604 = vsel %vm581, %v603, 0.0
    %605 = vadd.xlane.f32.xlu0 %v604
    %v606 = vpop.xlane.xlu0 %605
    %v607 = vsub.f32 %v593, %v606
    %vm608 = vcmask 7168
    %609 = vst.msk [vmem:[%s13] sm:$0xff] %vm608, %v580
    %vm610 = vcmask 15368
    %611 = vst.msk [vmem:[%s13] sm:$0xff] %vm610, %v607
    // Predicated region
    $region58: #{tpu_custom_call.1} parent=1 // pred_check
      _
    $region59: #{tpu_custom_call.1} parent=1 // pred_check_branch
      %613 = sbr.rel (0) target = $region61
    $region60: #{tpu_custom_call.1} parent=1 // pred_region
      _
    $region61: #{tpu_custom_call.1} parent=1 // pred_fallthru
      _
    // Predicated region
    $region62: #{tpu_custom_call.1} parent=1 // pred_check
      _
    $region63: #{tpu_custom_call.1} parent=1 // pred_check_branch
      %615 = sbr.rel (0) target = $region65
    $region64: #{tpu_custom_call.1} parent=1 // pred_region
      _
    $region65: #{tpu_custom_call.1} parent=1 // pred_fallthru
      _
    %616 = vsyncpa [#allocation3], 1

</llo_original>
